<compile_context>
chip_gen: v7x
topology: tpu7x:2x2x1
jax: 0.10.0
libtpu: 0.0.40
codegen_flags: <defaults>
</compile_context>

<pallas_src>
import functools
import math

import jax
import jax.numpy as jnp
from jax.experimental import pallas as pl
from jax.experimental.pallas import tpu as pltpu


# ----------------------------- small helpers --------------------------------

def _round_up(x, m):
    return ((x + m - 1) // m) * m


def _vmem_capacity_bytes():
    """Physical VMEM per TensorCore; conservative fallback if the query fails."""
    try:
        info = pltpu.get_tpu_info()
        cap = getattr(info, "vmem_capacity_bytes", None)
        if cap:
            return int(cap)
    except Exception:
        pass
    return 64 * 1024 * 1024  # v7x-sized: safe lower bound for every generation


def _balanced_tile(size, unit, cap, min_blocks=1):
    """Tile (multiple of `unit`, <= max(cap, unit)) giving near-equal blocks over `size`."""
    padded = _round_up(max(int(size), 1), unit)
    cap = max(int(cap), unit)
    nblocks = max(min_blocks, pl.cdiv(padded, cap))
    return _round_up(pl.cdiv(padded, nblocks), unit)


_TM_CAP = 512  # covers typical inference batches; large-M layers tile M in ~512 chunks


def _choose_tiles(N, K, in_bytes, use_bias, tn=None, tk=None):
    """Pick (tn, tk, vmem_limit_bytes) from the layer shape + device VMEM capacity."""
    cap = _vmem_capacity_bytes()
    budget = min(int(cap * 0.7), 96 * 1024 * 1024)  # ~45 MiB on v7x, ~90 MiB on v5e/v6e

    tn_cap = 2048 if budget >= 80 * 1024 * 1024 else 1024
    tk_cap = 1024

    if tk is None:
        tk = _balanced_tile(K, 128, tk_cap)
    if tn is None:
        # >=2 N blocks (when N allows) so both v7x TensorCores get work even at grid_M==1.
        min_blocks = 2 if _round_up(N, 128) >= 256 else 1
        tn = _balanced_tile(N, 128, tn_cap, min_blocks=min_blocks)
    assert tn % 128 == 0 and tk % 128 == 0, (tn, tk)

    def footprint(tn_c, tk_c):
        f = 2 * (_TM_CAP * tk_c) * in_bytes        # x tile, double-buffered
        f += 2 * (tk_c * tn_c) * in_bytes          # weight tile, double-buffered
        f += 2 * (_TM_CAP * tn_c) * 4              # output tile, double-buffered (f32)
        f += _TM_CAP * tn_c * 4                    # scratch allowance (narrow-out case)
        if use_bias:
            f += 2 * tn_c * 4
        return f

    # Shrink (K first, then N) until the pipelined footprint fits the VMEM budget.
    while footprint(tn, tk) > budget and tk > 128:
        tk = max(128, (tk // 2 // 128) * 128)
    while footprint(tn, tk) > budget and tn > 128:
        tn = max(128, (tn // 2 // 128) * 128)

    vmem_limit = int(min(max(budget, 32 * 1024 * 1024), cap))
    return tn, tk, vmem_limit


# ------------------------------- the kernel ---------------------------------

def _apply_nonlinearity(acc, nonlinearity):
    if nonlinearity is None:
        return acc
    if nonlinearity == "ReLU":
        return jnp.maximum(acc, 0.0)
    if nonlinearity == "Tanh":
        return jnp.tanh(acc)
    if nonlinearity == "Sigmoid":
        return jax.nn.sigmoid(acc)
    raise ValueError(f"unsupported nonlinearity: {nonlinearity}")


def _dense_kernel(*refs, use_bias, nonlinearity, compute_dtype, has_scratch):
    # refs: x [tm,tk], w [tk,tn], (bias [1,tn]), out [tm,tn], (acc scratch [tm,tn])
    if has_scratch:
        if use_bias:
            x_ref, w_ref, b_ref, o_ref, acc_ref = refs
        else:
            x_ref, w_ref, o_ref, acc_ref = refs
            b_ref = None
    else:
        if use_bias:
            x_ref, w_ref, b_ref, o_ref = refs
        else:
            x_ref, w_ref, o_ref = refs
            b_ref = None
        # f32 output: the output block is resident across the K axis -> accumulate in place.
        acc_ref = o_ref

    k = pl.program_id(2)

    @pl.when(k == 0)
    def _():
        acc_ref[...] = jnp.zeros_like(acc_ref)

    x = x_ref[...]
    w = w_ref[...]
    if compute_dtype is not None:
        x = x.astype(compute_dtype)
        w = w.astype(compute_dtype)
    # Weight is pre-transposed to [K, N]: plain NN matmul, no in-kernel transpose.
    acc_ref[...] += jnp.dot(x, w, preferred_element_type=jnp.float32)

    # Epilogue once per output tile: bias + nonlinearity on the last K step.
    @pl.when(k == pl.num_programs(2) - 1)
    def _():
        acc = acc_ref[...].astype(jnp.float32)
        if b_ref is not None:
            acc = acc + b_ref[...]              # broadcast [1, tn] over rows
        acc = _apply_nonlinearity(acc, nonlinearity)
        o_ref[...] = acc.astype(o_ref.dtype)


# ----------------------------- host-side wrapper ----------------------------

def prepare_dense(weight, bias=None, *, tn=None, tk=None):
    """One-time (model-load) prep for a Dense layer.

    weight: [N, K] float (PyTorch nn.Linear [out, in] convention).
    Transposes to [K, N] and zero-pads to the tile grid ONCE, so the per-call forward
    never pads or transposes the static weight. Returns a dict of prepared params.
    """
    N, K = weight.shape
    use_bias = bias is not None
    in_bytes = jnp.dtype(weight.dtype).itemsize
    tn, tk, vmem_limit = _choose_tiles(N, K, in_bytes, use_bias, tn=tn, tk=tk)

    Kp, Np = _round_up(K, tk), _round_up(N, tn)
    w_t = weight.T                                         # [K, N]; static parameter
    if (Kp, Np) != (K, N):
        w_t = jnp.pad(w_t, ((0, Kp - K), (0, Np - N)))     # zero K-tail contributes 0

    b_p = None
    if use_bias:
        b_p = bias if Np == N else jnp.pad(bias, (0, Np - N))
        b_p = b_p.reshape(1, Np).astype(jnp.float32)

    return dict(w=w_t, b=b_p, N=N, K=K, tn=tn, tk=tk, vmem_limit=vmem_limit)


def dense_forward(x, params, *, nonlinearity=None, compute_dtype=None):
    """Pallas Dense.forward (inference mode: dropout == identity).

    x: [M, K]; params: output of prepare_dense.
    compute_dtype=jnp.bfloat16 runs the MXU in native bf16 (f32 accumulation) — much
    faster but numerically looser than the f32 PyTorch reference.
    """
    M, K = x.shape
    assert K == params["K"], (K, params["K"])
    w, b = params["w"], params["b"]
    Kp, Np = w.shape
    tn, tk = params["tn"], params["tk"]
    use_bias = b is not None
    out_dtype = x.dtype

    tm = _balanced_tile(M, 8, _TM_CAP)
    Mp = _round_up(M, tm)
    xp = x if (Mp == M and Kp == K) else jnp.pad(x, ((0, Mp - M), (0, Kp - K)))

    grid = (Mp // tm, Np // tn, Kp // tk)

    in_specs = [
        pl.BlockSpec((tm, tk), lambda i, j, k: (i, k)),   # x tile
        pl.BlockSpec((tk, tn), lambda i, j, k: (k, j)),   # weight tile ([K, N] layout)
    ]
    operands = [xp, w]
    if use_bias:
        operands.append(b)
        in_specs.append(pl.BlockSpec((1, tn), lambda i, j, k: (0, j)))
    # When bias is None we simply do not pass a bias operand (no zero-vector DMA).

    # f32 outputs accumulate directly into the resident output block; narrow outputs
    # need an f32 VMEM scratch accumulator.
    needs_scratch = jnp.dtype(out_dtype).itemsize != 4
    scratch_shapes = [pltpu.VMEM((tm, tn), jnp.float32)] if needs_scratch else []

    kernel = functools.partial(
        _dense_kernel,
        use_bias=use_bias,
        nonlinearity=nonlinearity,
        compute_dtype=compute_dtype,
        has_scratch=needs_scratch,
    )

    # Advisory only; ignores padding and tile re-reads.
    flops = 2 * M * params["N"] * K
    transcendentals = M * params["N"] if nonlinearity in ("Tanh", "Sigmoid") else 0
    bytes_accessed = 4 * (M * K + params["N"] * K + M * params["N"]
                          + (params["N"] if use_bias else 0))

    out_p = pl.pallas_call(
        kernel,
        out_shape=jax.ShapeDtypeStruct((Mp, Np), out_dtype),
        grid_spec=pltpu.PrefetchScalarGridSpec(
            num_scalar_prefetch=0,
            grid=grid,
            in_specs=in_specs,
            out_specs=pl.BlockSpec((tm, tn), lambda i, j, k: (i, j)),
            scratch_shapes=scratch_shapes,
        ),
        compiler_params=pltpu.CompilerParams(
            # M / N shard across v7x's two TensorCores; K is the accumulation axis.
            dimension_semantics=("parallel", "parallel", "arbitrary"),
            vmem_limit_bytes=params["vmem_limit"],
        ),
        cost_estimate=pl.CostEstimate(
            flops=flops,
            transcendentals=transcendentals,
            bytes_accessed=bytes_accessed,
        ),
    )(*operands)

    if Mp != M or Np != params["N"]:
        out_p = out_p[:M, :params["N"]]
    return out_p


def xavier_normal(key, out_features, in_features, dtype=jnp.float32):
    # Matches nn.init.xavier_normal_ (gain=1): std = sqrt(2 / (fan_in + fan_out))
    std = math.sqrt(2.0 / (in_features + out_features))
    return std * jax.random.normal(key, (out_features, in_features), dtype)


if __name__ == "__main__":
    key = jax.random.PRNGKey(0)
    k_x, k_w, k_b = jax.random.split(key, 3)

    batch, in_features, out_features = 8, 32, 64
    nonlinearity = "ReLU"  # Dense(..., nonlinearity="ReLU"); None for bare Linear

    x = jax.random.normal(k_x, (batch, in_features), jnp.float32)
    weight = xavier_normal(k_w, out_features, in_features)
    # nn.Linear default bias init: U(-1/sqrt(fan_in), 1/sqrt(fan_in))
    bound = 1.0 / math.sqrt(in_features)
    bias = jax.random.uniform(
        k_b, (out_features,), jnp.float32, minval=-bound, maxval=bound
    )

    # One-time (model-load) weight prep: transpose to [K, N] + pad to the tile grid.
    params = prepare_dense(weight, bias)
    out = jax.block_until_ready(dense_forward(x, params, nonlinearity=nonlinearity))

    # Reference check in plain JAX (eval-mode dropout == identity).
    ref = jnp.maximum(x @ weight.T + bias, 0.0)
    assert out.shape == (batch, out_features)
    assert jnp.allclose(out, ref, atol=1e-5, rtol=1e-5)

    # Check 2: no-bias / no-nonlinearity path with a multi-tile grid over M, N and the
    # K reduction (padding on all axes) via explicit small tile overrides.
    M2, K2, N2 = 16, 160, 192
    x2 = jax.random.normal(jax.random.PRNGKey(1), (M2, K2), jnp.float32)
    w2 = 0.05 * jax.random.normal(jax.random.PRNGKey(2), (N2, K2), jnp.float32)
    p2 = prepare_dense(w2, None, tn=128, tk=128)
    out2 = jax.block_until_ready(dense_forward(x2, p2))
    ref2 = x2 @ w2.T
    assert out2.shape == (M2, N2)
    assert jnp.allclose(out2, ref2, atol=1e-4, rtol=1e-4)

    # Check 3: fast bf16 MXU path (f32 accumulation) with looser tolerance vs f32 ref.
    M3, K3, N3 = 64, 256, 256
    x3 = jax.random.normal(jax.random.PRNGKey(3), (M3, K3), jnp.float32)
    w3 = 0.05 * jax.random.normal(jax.random.PRNGKey(4), (N3, K3), jnp.float32)
    b3 = 0.1 * jax.random.normal(jax.random.PRNGKey(5), (N3,), jnp.float32)
    p3 = prepare_dense(w3, b3)
    out3 = jax.block_until_ready(
        dense_forward(x3, p3, nonlinearity="Tanh", compute_dtype=jnp.bfloat16)
    )
    ref3 = jnp.tanh(x3 @ w3.T + b3)
    assert out3.shape == (M3, N3)
    assert jnp.allclose(out3, ref3, atol=5e-2, rtol=5e-2)

    print("KERNEL_OK")
</pallas_src>

<mosaic_0001>
module attributes {stable_mosaic.version = 11 : i64} {
  func.func @_dense_kernel(%arg0: i32, %arg1: i32, %arg2: i32, %arg3: memref<8x128xf32, #tpu.memory_space<vmem>>, %arg4: memref<128x128xf32, #tpu.memory_space<vmem>>, %arg5: memref<1x128xf32, #tpu.memory_space<vmem>>, %arg6: memref<8x128xf32, #tpu.memory_space<vmem>>) attributes {dimension_semantics = [#tpu.dimension_semantics<parallel>, #tpu.dimension_semantics<parallel>, #tpu.dimension_semantics<arbitrary>], iteration_bounds = array<i64: 1, 1, 1>, scalar_prefetch = 0 : i64, scratch_operands = 0 : i64, tpu.core_type = #tpu.core_type<tc>, window_params = [{transform_indices = @transform_0, window_bounds = array<i64: 8, 128>}, {transform_indices = @transform_1, window_bounds = array<i64: 128, 128>}, {transform_indices = @transform_2, window_bounds = array<i64: 1, 128>}, {transform_indices = @transform_3, window_bounds = array<i64: 8, 128>}]} {
    %c0_i32 = arith.constant 0 : i32
    %0 = arith.cmpi eq, %arg2, %c0_i32 : i32
    %1 = arith.extui %0 : i1 to i32
    %c0_i32_0 = arith.constant 0 : i32
    %2 = arith.cmpi ne, %1, %c0_i32_0 : i32
    scf.if %2 {
      %cst_10 = arith.constant 0.000000e+00 : f32
      %12 = vector.broadcast %cst_10 : f32 to vector<8x128xf32>
      %c0_11 = arith.constant 0 : index
      %c0_12 = arith.constant 0 : index
      %13 = vector.load %arg6[%c0_11, %c0_12] : memref<8x128xf32, #tpu.memory_space<vmem>>, vector<8x128xf32>
      tpu.vector_store %arg6[%c0_11, %c0_12], %12 {strides = array<i32>} : memref<8x128xf32, #tpu.memory_space<vmem>>, vector<8x128xf32>,
    } else {
    }
    %c0 = arith.constant 0 : index
    %c0_1 = arith.constant 0 : index
    %3 = vector.load %arg3[%c0, %c0_1] : memref<8x128xf32, #tpu.memory_space<vmem>>, vector<8x128xf32>
    %c0_2 = arith.constant 0 : index
    %c0_3 = arith.constant 0 : index
    %4 = vector.load %arg4[%c0_2, %c0_3] : memref<128x128xf32, #tpu.memory_space<vmem>>, vector<128x128xf32>
    %c0_4 = arith.constant 0 : index
    %c0_5 = arith.constant 0 : index
    %5 = vector.load %arg6[%c0_4, %c0_5] : memref<8x128xf32, #tpu.memory_space<vmem>>, vector<8x128xf32>
    %cst = arith.constant dense<0.000000e+00> : vector<8x128xf32>
    %6 = tpu.matmul %3, %4, %cst {dimension_numbers = #tpu.dot_dimension_numbers<[1], [0], [0], [1], [0, 0, 1, 1], [], []>} : vector<8x128xf32>, vector<128x128xf32>, vector<8x128xf32> -> vector<8x128xf32>
    %7 = arith.addf %5, %6 : vector<8x128xf32>
    %c0_6 = arith.constant 0 : index
    %c0_7 = arith.constant 0 : index
    %8 = vector.load %arg6[%c0_6, %c0_7] : memref<8x128xf32, #tpu.memory_space<vmem>>, vector<8x128xf32>
    tpu.vector_store %arg6[%c0_6, %c0_7], %7 {strides = array<i32>} : memref<8x128xf32, #tpu.memory_space<vmem>>, vector<8x128xf32>,
    %c0_i32_8 = arith.constant 0 : i32
    %9 = arith.cmpi eq, %arg2, %c0_i32_8 : i32
    %10 = arith.extui %9 : i1 to i32
    %c0_i32_9 = arith.constant 0 : i32
    %11 = arith.cmpi ne, %10, %c0_i32_9 : i32
    scf.if %11 {
      %c0_10 = arith.constant 0 : index
      %c0_11 = arith.constant 0 : index
      %12 = vector.load %arg6[%c0_10, %c0_11] : memref<8x128xf32, #tpu.memory_space<vmem>>, vector<8x128xf32>
      %c0_12 = arith.constant 0 : index
      %c0_13 = arith.constant 0 : index
      %13 = vector.load %arg5[%c0_12, %c0_13] : memref<1x128xf32, #tpu.memory_space<vmem>>, vector<1x128xf32>
      %14 = vector.broadcast %13 : vector<1x128xf32> to vector<8x128xf32>
      %15 = arith.addf %12, %14 : vector<8x128xf32>
      %cst_14 = arith.constant 0.000000e+00 : f32
      %16 = vector.broadcast %cst_14 : f32 to vector<8x128xf32>
      %17 = arith.maximumf %15, %16 : vector<8x128xf32>
      %c0_15 = arith.constant 0 : index
      %c0_16 = arith.constant 0 : index
      %18 = vector.load %arg6[%c0_15, %c0_16] : memref<8x128xf32, #tpu.memory_space<vmem>>, vector<8x128xf32>
      tpu.vector_store %arg6[%c0_15, %c0_16], %17 {strides = array<i32>} : memref<8x128xf32, #tpu.memory_space<vmem>>, vector<8x128xf32>,
    } else {
    }
    return
  }
  func.func @transform_0(%arg0: i32, %arg1: i32, %arg2: i32) -> (i32, i32) {
    %c0_i32 = arith.constant 0 : i32
    return %arg0, %arg2 : i32, i32
  }
  func.func @transform_1(%arg0: i32, %arg1: i32, %arg2: i32) -> (i32, i32) {
    %c0_i32 = arith.constant 0 : i32
    return %arg2, %arg1 : i32, i32
  }
  func.func @transform_2(%arg0: i32, %arg1: i32, %arg2: i32) -> (i32, i32) {
    %c0_i32 = arith.constant 0 : i32
    %c0_i32_0 = arith.constant 0 : i32
    return %c0_i32, %arg1 : i32, i32
  }
  func.func @transform_3(%arg0: i32, %arg1: i32, %arg2: i32) -> (i32, i32) {
    %c0_i32 = arith.constant 0 : i32
    return %arg0, %arg1 : i32, i32
  }
}

</mosaic_0001>

<llo_original>
// kernel: tpu_custom_call.1
$region0: #{tpu_custom_call.1}
  #allocation0 [shape = 'u32[]', space=smem, size = 0x4, offset = 0x4, fixed_abs, tag = 'smem constant byte address 0x4 - core index']
  #allocation1 [shape = 'u32[144,128]{1,0:T(1,128)}', space=vmem, size = 0x12000, scoped, tag = 'internal scratch']
  %s0 = inlined_call_operand.hbm [shape: f32[8,128], index: 0, kind: input, shape index: {}]
  %s1 = inlined_call_operand.hbm [shape: f32[128,128], index: 1, kind: input, shape index: {}]
  %s2 = inlined_call_operand.vmem [shape: f32[1,128], index: 2, kind: input, shape index: {}]
  %s3 = inlined_call_operand.hbm [shape: f32[8,128], index: 3, kind: output, shape index: {}]
  %s4 = sld [smem:[#allocation0]]
  $region38: #{tpu_custom_call.1} parent=0
    _
  %s6 = ssub.s32 1, %s4
  %s7 = scalar_select 0, %s6, %s4
  $region1: #{tpu_custom_call.1} parent=0
    #allocation2 [shape = 'u8[4096]{0}', space=vmem, size = 0x1000, scoped, tag = 'input window, operand 0, single buffered']
    #allocation3 [shape = 's32[1]{0}', space=sflag, size = 0x4, scoped, tag = 'scoped memory for tpu_custom_call.1']
    #allocation4 [shape = 's32[1]{0}', space=sflag, size = 0x4, scoped, tag = 'scoped memory for tpu_custom_call.1']
    #allocation5 [shape = 'u8[65536]{0}', space=vmem, size = 0x10000, scoped, tag = 'input window, operand 1, single buffered']
    #allocation6 [shape = 's32[1]{0}', space=sflag, size = 0x4, scoped, tag = 'scoped memory for tpu_custom_call.1']
    #allocation7 [shape = 'u8[4096]{0}', space=vmem, size = 0x1000, scoped, tag = 'output window, operand 0, single buffered']
    %8 = vsyncpa [#allocation3], 0
    %9 = vsyncpa [#allocation6], 0
    %10 = vsyncpa [#allocation4], 0
    // Predicated region
    $region2: #{tpu_custom_call.1} parent=1 // pred_check
      _
    $region3: #{tpu_custom_call.1} parent=1 // pred_check_branch
      %12 = sbr.rel (0) target = $region5
    $region4: #{tpu_custom_call.1} parent=1 // pred_region
      %s14 = ssub.s32 128, 128
      %15 = vsyncadd [#allocation3], %s14
      %s17 = sshll.u32 [#allocation2], 4
      %s18 = int_to_ptr.vmem [resolvable:$true] %s17
      %20 = dma.hbm_to_vmem [thread:$0]  %s0, 128, %s18, [#allocation3]
    $region5: #{tpu_custom_call.1} parent=1 // pred_fallthru
      _
    // Predicated region
    $region6: #{tpu_custom_call.1} parent=1 // pred_check
      _
    $region7: #{tpu_custom_call.1} parent=1 // pred_check_branch
      %22 = sbr.rel (0) target = $region9
    $region8: #{tpu_custom_call.1} parent=1 // pred_region
      %s24 = ssub.s32 2048, 2048
      %25 = vsyncadd [#allocation6], %s24
      %s26 = sshll.u32 [#allocation5], 4
      %s27 = int_to_ptr.vmem [resolvable:$true] %s26
      %32 = dma.hbm_to_vmem [thread:$0]  %s1, 2048, %s27, [#allocation6], 128, 128, 8
    $region9: #{tpu_custom_call.1} parent=1 // pred_fallthru
      _
    // Predicated region
    $region10: #{tpu_custom_call.1} parent=1 // pred_check
      _
    $region11: #{tpu_custom_call.1} parent=1 // pred_check_branch
      %34 = sbr.rel (0) target = $region13
    $region12: #{tpu_custom_call.1} parent=1 // pred_region
      _
    $region13: #{tpu_custom_call.1} parent=1 // pred_fallthru
      _
    // Predicated region
    $region14: #{tpu_custom_call.1} parent=1 // pred_check
      _
    $region15: #{tpu_custom_call.1} parent=1 // pred_check_branch
      %36 = sbr.rel (0) target = $region17
    $region16: #{tpu_custom_call.1} parent=1 // pred_region
      %37 = dma.done [#allocation3], 128
    $region17: #{tpu_custom_call.1} parent=1 // pred_fallthru
      _
    // Predicated region
    $region18: #{tpu_custom_call.1} parent=1 // pred_check
      _
    $region19: #{tpu_custom_call.1} parent=1 // pred_check_branch
      %39 = sbr.rel (0) target = $region21
    $region20: #{tpu_custom_call.1} parent=1 // pred_region
      %40 = dma.done [#allocation6], 2048
    $region21: #{tpu_custom_call.1} parent=1 // pred_fallthru
      _
    %p41 = scmp.eq.s32.totalorder 0, 0
    // Predicated region
    $region22: #{tpu_custom_call.1} parent=1 // pred_check
      %p42 = pneg %p41
    $region23: #{tpu_custom_call.1} parent=1 // pred_check_branch
      %44 = sbr.rel (%p42) target = $region25
    $region24: #{tpu_custom_call.1} parent=1 // pred_region
      %45 = vst [vmem:[#allocation7] sm:$0xff] 0.0
    $region25: #{tpu_custom_call.1} parent=1 // pred_fallthru
      _
    %v46 = vld [vmem:[#allocation2] sm:$0xff]
    %v47 = vld [vmem:[#allocation5] sm:$0xff]
    %v48 = vld [vmem:[#allocation5 + $0x8] sm:$0xff]
    %v49 = vld [vmem:[#allocation5 + $0x10] sm:$0xff]
    %v50 = vld [vmem:[#allocation5 + $0x18] sm:$0xff]
    %v51 = vld [vmem:[#allocation5 + $0x20] sm:$0xff]
    %v52 = vld [vmem:[#allocation5 + $0x28] sm:$0xff]
    %v53 = vld [vmem:[#allocation5 + $0x30] sm:$0xff]
    %v54 = vld [vmem:[#allocation5 + $0x38] sm:$0xff]
    %v55 = vld [vmem:[#allocation5 + $0x40] sm:$0xff]
    %v56 = vld [vmem:[#allocation5 + $0x48] sm:$0xff]
    %v57 = vld [vmem:[#allocation5 + $0x50] sm:$0xff]
    %v58 = vld [vmem:[#allocation5 + $0x58] sm:$0xff]
    %v59 = vld [vmem:[#allocation5 + $0x60] sm:$0xff]
    %v60 = vld [vmem:[#allocation5 + $0x68] sm:$0xff]
    %v61 = vld [vmem:[#allocation5 + $0x70] sm:$0xff]
    %v62 = vld [vmem:[#allocation5 + $0x78] sm:$0xff]
    %v63 = vld [vmem:[#allocation7] sm:$0xff]
    %64 = vmatprep.subr.mxu0 0.0
    %65 = vmatpush1.msra.mxu0 %v47
    %66 = vmatprep.subr.mxu0 0.0
    %67 = vmatpush1.msra.mxu0 %v48
    %68 = vmatprep.subr.mxu0 0.0
    %69 = vmatpush1.msra.mxu0 %v49
    %70 = vmatprep.subr.mxu0 0.0
    %71 = vmatpush1.msra.mxu0 %v50
    %72 = vmatprep.subr.mxu0 0.0
    %73 = vmatpush1.msra.mxu0 %v51
    %74 = vmatprep.subr.mxu0 0.0
    %75 = vmatpush1.msra.mxu0 %v52
    %76 = vmatprep.subr.mxu0 0.0
    %77 = vmatpush1.msra.mxu0 %v53
    %78 = vmatprep.subr.mxu0 0.0
    %79 = vmatpush1.msra.mxu0 %v54
    %80 = vmatprep.subr.mxu0 0.0
    %81 = vmatpush1.msra.mxu0 %v55
    %82 = vmatprep.subr.mxu0 0.0
    %83 = vmatpush1.msra.mxu0 %v56
    %84 = vmatprep.subr.mxu0 0.0
    %85 = vmatpush1.msra.mxu0 %v57
    %86 = vmatprep.subr.mxu0 0.0
    %87 = vmatpush1.msra.mxu0 %v58
    %88 = vmatprep.subr.mxu0 0.0
    %89 = vmatpush1.msra.mxu0 %v59
    %90 = vmatprep.subr.mxu0 0.0
    %91 = vmatpush1.msra.mxu0 %v60
    %92 = vmatprep.subr.mxu0 0.0
    %93 = vmatpush1.msra.mxu0 %v61
    %94 = vmatprep.subr.mxu0 0.0
    %95 = vmatpush1.msra.mxu0 %v62
    %96 = vmatprep.subr.mxu0 0.0
    %97 = vmatpush1.msra.mxu0 0.0
    %98 = vmatprep.subr.mxu0 0.0
    %99 = vmatpush1.msra.mxu0 0.0
    %100 = vmatprep.subr.mxu0 0.0
    %101 = vmatpush1.msra.mxu0 0.0
    %102 = vmatprep.subr.mxu0 0.0
    %103 = vmatpush1.msra.mxu0 0.0
    %104 = vmatprep.subr.mxu0 0.0
    %105 = vmatpush1.msra.mxu0 0.0
    %106 = vmatprep.subr.mxu0 0.0
    %107 = vmatpush1.msra.mxu0 0.0
    %108 = vmatprep.subr.mxu0 0.0
    %109 = vmatpush1.msra.mxu0 0.0
    %110 = vmatprep.subr.mxu0 0.0
    %111 = vmatpush1.msra.mxu0 0.0
    %112 = vmatprep.subr.mxu0 0.0
    %113 = vmatpush1.msra.mxu0 0.0
    %114 = vmatprep.subr.mxu0 0.0
    %115 = vmatpush1.msra.mxu0 0.0
    %116 = vmatprep.subr.mxu0 0.0
    %117 = vmatpush1.msra.mxu0 0.0
    %118 = vmatprep.subr.mxu0 0.0
    %119 = vmatpush1.msra.mxu0 0.0
    %120 = vmatprep.subr.mxu0 0.0
    %121 = vmatpush1.msra.mxu0 0.0
    %122 = vmatprep.subr.mxu0 0.0
    %123 = vmatpush1.msra.mxu0 0.0
    %124 = vmatprep.subr.mxu0 0.0
    %125 = vmatpush1.msra.mxu0 0.0
    %126 = vmatprep.subr.mxu0 0.0
    %127 = vmatpush1.msra.mxu0 0.0
    %128 = vmatprep.mubr.f32.mxu0 0.0
    %129 = vmatmul.mubr.f32.gmra.mrb[0].mxu0 %v46
    %v130 = vpop.f32.mrb[0].mxu0
    %v131 = vadd.f32 0.0, %v130
    %v132 = vpop.f32.mrb[0].mxu0
    %133 = vdwg.mxu0
    %v134 = vadd.f32 %v63, %v131
    %135 = vst [vmem:[#allocation7] sm:$0xff] %v134
    // Predicated region
    $region26: #{tpu_custom_call.1} parent=1 // pred_check
      %p136 = pneg %p41
    $region27: #{tpu_custom_call.1} parent=1 // pred_check_branch
      %138 = sbr.rel (%p136) target = $region29
    $region28: #{tpu_custom_call.1} parent=1 // pred_region
      %v139 = vld [vmem:[#allocation7] sm:$0xff]
      %v140 = vld [vmem:[%s2] sm:$0x1]
      %v142 = vlaneseq
      %v143 = vshrl.u32 %v142, 7
      %v144 = vsub.s32 0, %v143
      %v145 = vrot.slane %v140, %v144
      %v147 = vadd.f32 %v139, %v145
      %v148 = vmax.f32 %v147, 0.0
      %149 = vst [vmem:[#allocation7] sm:$0xff] %v148
    $region29: #{tpu_custom_call.1} parent=1 // pred_fallthru
      _
    // Predicated region
    $region30: #{tpu_custom_call.1} parent=1 // pred_check
      _
    $region31: #{tpu_custom_call.1} parent=1 // pred_check_branch
      %151 = sbr.rel (0) target = $region33
    $region32: #{tpu_custom_call.1} parent=1 // pred_region
      %s153 = ssub.s32 128, 128
      %154 = vsyncadd [#allocation4], %s153
      %s156 = sshll.u32 [#allocation7], 4
      %s157 = int_to_ptr.vmem [resolvable:$true] %s156
      %159 = dma.vmem_to_hbm [thread:$0]  %s157, 128, %s3, [#allocation4]
    $region33: #{tpu_custom_call.1} parent=1 // pred_fallthru
      _
    // Predicated region
    $region34: #{tpu_custom_call.1} parent=1 // pred_check
      _
    $region35: #{tpu_custom_call.1} parent=1 // pred_check_branch
      %161 = sbr.rel (0) target = $region37
    $region36: #{tpu_custom_call.1} parent=1 // pred_region
      %162 = dma.done [#allocation4], 128
    $region37: #{tpu_custom_call.1} parent=1 // pred_fallthru
      _
    %163 = vsyncpa [#allocation3], 1
    %164 = vsyncpa [#allocation6], 1
    %165 = vsyncpa [#allocation4], 1

</llo_original>
